<compile_context>
chip_gen: v7x
topology: tpu7x:2x2x1
jax: 0.10.0
libtpu: 0.0.40
codegen_flags: <defaults>
</compile_context>

<pallas_src>
import jax
import jax.numpy as jnp
from jax.experimental import pallas as pl
from jax.experimental.pallas import tpu as pltpu


# ----------------------------- Pallas kernel -----------------------------

def disc_fused_kernel(xT_ref, w_ref, gn_ref, wq_ref, bq_ref, fc_ref, out_ref):
    """Per-sample fused patch-embed + GroupNorm(C groups) + ReLU + 1x1 conv + fc mul.

    Channel-major (lane axis = P):
      xT: (K, P) bf16   w:  (C, K) bf16   gn: (C, 2) f32  [gamma | beta]
      wq: (Q, C) bf16   bq: (Q, 1) f32    fc: (Q, P) f32  (fc[q,p] == fc_w[0, q*P+p])
      out: (Q, P) f32
    """
    # embed conv as matmul; bias omitted (cancels under per-channel GN mean-sub).
    hT = jnp.dot(w_ref[...], xT_ref[...],
                 preferred_element_type=jnp.float32)          # (C, P) f32

    # GroupNorm with num_groups == C (one channel per group): per-channel stats
    # over the P positions, single pass (biased var, eps=1e-5 like PyTorch).
    P = hT.shape[-1]
    inv_p = 1.0 / P
    s1 = jnp.sum(hT, axis=-1, keepdims=True)                  # (C, 1)
    s2 = jnp.sum(hT * hT, axis=-1, keepdims=True)             # (C, 1)
    mean = s1 * inv_p
    var = jnp.maximum(s2 * inv_p - mean * mean, 0.0)

    gn = gn_ref[...]
    gamma = gn[:, 0:1]
    beta = gn[:, 1:2]
    scale = gamma * jax.lax.rsqrt(var + 1e-5)                 # (C, 1)
    shift = beta - mean * scale                               # (C, 1)
    hn = jnp.maximum(hT * scale + shift, 0.0)                 # GN affine + ReLU

    # 1x1 quant_conv + fc multiply: (q * ||fc_w||) * (fc_w / ||fc_w||) == q * fc_w
    qT = jnp.dot(wq_ref[...], hn.astype(jnp.bfloat16),
                 preferred_element_type=jnp.float32) + bq_ref[...]   # (Q, P)
    out_ref[...] = qT * fc_ref[...]


# ----------------------------- pallas_call wrapper -----------------------------

def run_discriminator_core(patches, w_mat, gn_pack, wq, bq, fc_qp):
    B, K, P = patches.shape
    C = w_mat.shape[0]
    Q = wq.shape[0]
    return pl.pallas_call(
        disc_fused_kernel,
        out_shape=jax.ShapeDtypeStruct((B, Q, P), jnp.float32),
        grid=(B,),
        in_specs=[
            pl.BlockSpec((pl.Squeezed(), K, P), lambda b: (b, 0, 0)),   # patches
            pl.BlockSpec((C, K), lambda b: (0, 0)),                     # embed w
            pl.BlockSpec((C, 2), lambda b: (0, 0)),                     # gamma|beta
            pl.BlockSpec((Q, C), lambda b: (0, 0)),                     # quant w
            pl.BlockSpec((Q, 1), lambda b: (0, 0)),                     # quant b
            pl.BlockSpec((Q, P), lambda b: (0, 0)),                     # fc_w (Q,P)
        ],
        out_specs=pl.BlockSpec((pl.Squeezed(), Q, P), lambda b: (b, 0, 0)),
        compiler_params=pltpu.CompilerParams(
            # batch axis: shards across v7x's 2 TensorCores; cheap loop elsewhere
            dimension_semantics=("parallel",),
            vmem_limit_bytes=32 * 1024 * 1024,
        ),
    )(patches, w_mat, gn_pack, wq, bq, fc_qp)


# ----------------------------- model glue -----------------------------

def to_patches_cm(x, ps):
    """NCHW -> (B, Cin*ps*ps, P) channel-major patches.

    k-order is (Cin, kh, kw), matching conv-weight flatten; p = i*W' + j."""
    B, C, H, W = x.shape
    x = x.reshape(B, C, H // ps, ps, W // ps, ps)
    x = x.transpose(0, 1, 3, 5, 2, 4)          # (B, C, ps, ps, H', W')
    return x.reshape(B, C * ps * ps, (H // ps) * (W // ps))


def discriminator_forward(params, imgs, edges, training=True):
    ps = params["patch_size"]
    C = params["embed_dim"]
    Q = params["quant_dim"]
    # The kernel's GroupNorm (per-channel stats) and the embed-bias elision are
    # exact only for one-channel groups.
    assert params["num_groups"] == C, "kernel assumes num_groups == embed_dim"

    B = edges.shape[0]
    cur_res = edges.shape[-1] // ps
    P = cur_res * cur_res

    # With default hidden_dims=() the encoder/decoder lists are empty, so the
    # `context = embed(imgs)` path in the reference module is dead code -> skip.
    del imgs

    patches = to_patches_cm(edges, ps).astype(jnp.bfloat16)          # (B, K, P)
    w_mat = params["embed_w"].reshape(C, -1).astype(jnp.bfloat16)    # (C, K)
    # embed bias intentionally unused: cancelled by GN mean-subtraction.
    gn_pack = jnp.stack(
        [params["gn_gamma"], params["gn_beta"]], axis=1).astype(jnp.float32)  # (C,2)
    wq = params["quant_w"].reshape(Q, C).astype(jnp.bfloat16)        # (Q, C)
    bq = params["quant_b"].reshape(Q, 1).astype(jnp.float32)         # (Q, 1)
    # fc_w is channel-major (torch flatten of NCHW): index = q*P + p -> (Q, P).
    fc_qp = params["fc_w"].reshape(Q, P).astype(jnp.float32)

    out_qp = run_discriminator_core(patches, w_mat, gn_pack, wq, bq, fc_qp)  # (B,Q,P)

    # (B, Q, P) is already torch.flatten(NCHW) order -> free reshape, no transpose.
    flat = out_qp.reshape(B, Q * P)

    if training:
        # .detach() has no effect on forward values: logits == dir numerically.
        return {"logits": flat, "dir": flat}
    return {"logits": flat}


# ----------------------------- main -----------------------------

if __name__ == "__main__":
    # small, config-consistent shapes:
    # in_channels=3, in_res=16, embed_dim=32, patch_size=4, num_groups=32,
    # hidden_dims=() (default) -> no encoder/decoder blocks, quant_dim=embed_dim
    in_channels, in_res, embed_dim, patch_size = 3, 16, 32, 4
    quant_dim = embed_dim
    num_groups = 32
    cur_res = in_res // patch_size
    B = 2

    key = jax.random.PRNGKey(0)
    ks = jax.random.split(key, 8)

    params = {
        "patch_size": patch_size,
        "embed_dim": embed_dim,
        "quant_dim": quant_dim,
        "num_groups": num_groups,
        "embed_w": 0.1 * jax.random.normal(
            ks[0], (embed_dim, in_channels, patch_size, patch_size), jnp.float32),
        "embed_b": 0.01 * jax.random.normal(ks[1], (embed_dim,), jnp.float32),
        "gn_gamma": jnp.ones((embed_dim,), jnp.float32),   # nn.GroupNorm defaults
        "gn_beta": jnp.zeros((embed_dim,), jnp.float32),
        "quant_w": 0.1 * jax.random.normal(
            ks[2], (quant_dim, embed_dim, 1, 1), jnp.float32),
        "quant_b": 0.01 * jax.random.normal(ks[3], (quant_dim,), jnp.float32),
        "fc_w": jax.random.normal(ks[4], (1, quant_dim * cur_res ** 2), jnp.float32),
    }

    imgs = jax.random.normal(ks[5], (B, in_channels, in_res, in_res), jnp.float32)
    edges = jax.random.normal(ks[6], (B, in_channels, in_res, in_res), jnp.float32)

    out = discriminator_forward(params, imgs, edges, training=True)
    jax.block_until_ready(out["logits"])
    jax.block_until_ready(out["dir"])
    assert out["logits"].shape == (B, quant_dim * cur_res ** 2)
    assert out["dir"].shape == (B, quant_dim * cur_res ** 2)
    print("KERNEL_OK")
</pallas_src>

<mosaic_0001>
module attributes {stable_mosaic.version = 11 : i64} {
  func.func @disc_fused_kernel(%arg0: i32, %arg1: memref<1x48x16xbf16, #tpu.memory_space<vmem>>, %arg2: memref<32x48xbf16, #tpu.memory_space<vmem>>, %arg3: memref<32x2xf32, #tpu.memory_space<vmem>>, %arg4: memref<32x32xbf16, #tpu.memory_space<vmem>>, %arg5: memref<32x1xf32, #tpu.memory_space<vmem>>, %arg6: memref<32x16xf32, #tpu.memory_space<vmem>>, %arg7: memref<1x32x16xf32, #tpu.memory_space<vmem>>) attributes {dimension_semantics = [#tpu.dimension_semantics<parallel>], iteration_bounds = array<i64: 2>, scalar_prefetch = 0 : i64, scratch_operands = 0 : i64, tpu.core_type = #tpu.core_type<tc>, window_params = [{transform_indices = @transform_0, window_bounds = array<i64: 1, 48, 16>}, {pipeline_mode = #tpu.pipeline_mode<synchronous>, transform_indices = @transform_1, window_bounds = array<i64: 32, 48>}, {pipeline_mode = #tpu.pipeline_mode<synchronous>, transform_indices = @transform_2, window_bounds = array<i64: 32, 2>}, {pipeline_mode = #tpu.pipeline_mode<synchronous>, transform_indices = @transform_3, window_bounds = array<i64: 32, 32>}, {pipeline_mode = #tpu.pipeline_mode<synchronous>, transform_indices = @transform_4, window_bounds = array<i64: 32, 1>}, {pipeline_mode = #tpu.pipeline_mode<synchronous>, transform_indices = @transform_5, window_bounds = array<i64: 32, 16>}, {transform_indices = @transform_6, window_bounds = array<i64: 1, 32, 16>}]} {
    %c0 = arith.constant 0 : index
    %c0_0 = arith.constant 0 : index
    %0 = vector.load %arg2[%c0, %c0_0] : memref<32x48xbf16, #tpu.memory_space<vmem>>, vector<32x48xbf16>
    %c0_1 = arith.constant 0 : index
    %c0_2 = arith.constant 0 : index
    %c0_3 = arith.constant 0 : index
    %1 = vector.load %arg1[%c0_1, %c0_2, %c0_3] : memref<1x48x16xbf16, #tpu.memory_space<vmem>>, vector<1x48x16xbf16>
    %2 = vector.shape_cast %1 : vector<1x48x16xbf16> to vector<48x16xbf16>
    %cst = arith.constant dense<0.000000e+00> : vector<32x16xf32>
    %3 = tpu.matmul %0, %2, %cst {dimension_numbers = #tpu.dot_dimension_numbers<[1], [0], [0], [1], [0, 0, 1, 1], [], []>} : vector<32x48xbf16>, vector<48x16xbf16>, vector<32x16xf32> -> vector<32x16xf32>
    %cst_4 = arith.constant dense<0.000000e+00> : vector<32xf32>
    %4 = vector.multi_reduction <add>, %3, %cst_4 [1] : vector<32x16xf32> to vector<32xf32>
    %5 = vector.shape_cast %4 : vector<32xf32> to vector<32x1xf32>
    %6 = arith.mulf %3, %3 : vector<32x16xf32>
    %cst_5 = arith.constant dense<0.000000e+00> : vector<32xf32>
    %7 = vector.multi_reduction <add>, %6, %cst_5 [1] : vector<32x16xf32> to vector<32xf32>
    %8 = vector.shape_cast %7 : vector<32xf32> to vector<32x1xf32>
    %cst_6 = arith.constant 6.250000e-02 : f32
    %9 = vector.broadcast %cst_6 : f32 to vector<32x1xf32>
    %10 = arith.mulf %5, %9 : vector<32x1xf32>
    %cst_7 = arith.constant 6.250000e-02 : f32
    %11 = vector.broadcast %cst_7 : f32 to vector<32x1xf32>
    %12 = arith.mulf %8, %11 : vector<32x1xf32>
    %13 = arith.mulf %10, %10 : vector<32x1xf32>
    %14 = arith.subf %12, %13 : vector<32x1xf32>
    %cst_8 = arith.constant 0.000000e+00 : f32
    %15 = vector.broadcast %cst_8 : f32 to vector<32x1xf32>
    %16 = arith.maximumf %14, %15 : vector<32x1xf32>
    %c0_9 = arith.constant 0 : index
    %c0_10 = arith.constant 0 : index
    %17 = vector.load %arg3[%c0_9, %c0_10] : memref<32x2xf32, #tpu.memory_space<vmem>>, vector<32x2xf32>
    %18 = vector.extract_strided_slice %17 {offsets = [0, 0], sizes = [32, 1], strides = [1, 1]} : vector<32x2xf32> to vector<32x1xf32>
    %19 = vector.extract_strided_slice %17 {offsets = [0, 1], sizes = [32, 1], strides = [1, 1]} : vector<32x2xf32> to vector<32x1xf32>
    %cst_11 = arith.constant 9.99999974E-6 : f32
    %20 = vector.broadcast %cst_11 : f32 to vector<32x1xf32>
    %21 = arith.addf %16, %20 : vector<32x1xf32>
    %22 = math.rsqrt %21 : vector<32x1xf32>
    %23 = arith.mulf %18, %22 : vector<32x1xf32>
    %24 = arith.mulf %10, %23 : vector<32x1xf32>
    %25 = arith.subf %19, %24 : vector<32x1xf32>
    %26 = vector.broadcast %23 : vector<32x1xf32> to vector<32x16xf32>
    %27 = arith.mulf %3, %26 : vector<32x16xf32>
    %28 = vector.broadcast %25 : vector<32x1xf32> to vector<32x16xf32>
    %29 = arith.addf %27, %28 : vector<32x16xf32>
    %cst_12 = arith.constant 0.000000e+00 : f32
    %30 = vector.broadcast %cst_12 : f32 to vector<32x16xf32>
    %31 = arith.maximumf %29, %30 : vector<32x16xf32>
    %c0_13 = arith.constant 0 : index
    %c0_14 = arith.constant 0 : index
    %32 = vector.load %arg4[%c0_13, %c0_14] : memref<32x32xbf16, #tpu.memory_space<vmem>>, vector<32x32xbf16>
    %33 = arith.truncf %31 : vector<32x16xf32> to vector<32x16xbf16>
    %cst_15 = arith.constant dense<0.000000e+00> : vector<32x16xf32>
    %34 = tpu.matmul %32, %33, %cst_15 {dimension_numbers = #tpu.dot_dimension_numbers<[1], [0], [0], [1], [0, 0, 1, 1], [], []>} : vector<32x32xbf16>, vector<32x16xbf16>, vector<32x16xf32> -> vector<32x16xf32>
    %c0_16 = arith.constant 0 : index
    %c0_17 = arith.constant 0 : index
    %35 = vector.load %arg5[%c0_16, %c0_17] : memref<32x1xf32, #tpu.memory_space<vmem>>, vector<32x1xf32>
    %36 = vector.broadcast %35 : vector<32x1xf32> to vector<32x16xf32>
    %37 = arith.addf %34, %36 : vector<32x16xf32>
    %c0_18 = arith.constant 0 : index
    %c0_19 = arith.constant 0 : index
    %38 = vector.load %arg6[%c0_18, %c0_19] : memref<32x16xf32, #tpu.memory_space<vmem>>, vector<32x16xf32>
    %39 = arith.mulf %37, %38 : vector<32x16xf32>
    %c0_20 = arith.constant 0 : index
    %c0_21 = arith.constant 0 : index
    %c0_22 = arith.constant 0 : index
    %40 = vector.load %arg7[%c0_20, %c0_21, %c0_22] : memref<1x32x16xf32, #tpu.memory_space<vmem>>, vector<1x32x16xf32>
    %41 = vector.shape_cast %40 : vector<1x32x16xf32> to vector<32x16xf32>
    %42 = vector.shape_cast %39 : vector<32x16xf32> to vector<1x32x16xf32>
    tpu.vector_store %arg7[%c0_20, %c0_21, %c0_22], %42 {strides = array<i32>} : memref<1x32x16xf32, #tpu.memory_space<vmem>>, vector<1x32x16xf32>,
    return
  }
  func.func @transform_0(%arg0: i32) -> (i32, i32, i32) {
    %c0_i32 = arith.constant 0 : i32
    %c0_i32_0 = arith.constant 0 : i32
    %c0_i32_1 = arith.constant 0 : i32
    return %arg0, %c0_i32, %c0_i32_0 : i32, i32, i32
  }
  func.func @transform_1(%arg0: i32) -> (i32, i32) {
    %c0_i32 = arith.constant 0 : i32
    %c0_i32_0 = arith.constant 0 : i32
    %c0_i32_1 = arith.constant 0 : i32
    return %c0_i32, %c0_i32_0 : i32, i32
  }
  func.func @transform_2(%arg0: i32) -> (i32, i32) {
    %c0_i32 = arith.constant 0 : i32
    %c0_i32_0 = arith.constant 0 : i32
    %c0_i32_1 = arith.constant 0 : i32
    return %c0_i32, %c0_i32_0 : i32, i32
  }
  func.func @transform_3(%arg0: i32) -> (i32, i32) {
    %c0_i32 = arith.constant 0 : i32
    %c0_i32_0 = arith.constant 0 : i32
    %c0_i32_1 = arith.constant 0 : i32
    return %c0_i32, %c0_i32_0 : i32, i32
  }
  func.func @transform_4(%arg0: i32) -> (i32, i32) {
    %c0_i32 = arith.constant 0 : i32
    %c0_i32_0 = arith.constant 0 : i32
    %c0_i32_1 = arith.constant 0 : i32
    return %c0_i32, %c0_i32_0 : i32, i32
  }
  func.func @transform_5(%arg0: i32) -> (i32, i32) {
    %c0_i32 = arith.constant 0 : i32
    %c0_i32_0 = arith.constant 0 : i32
    %c0_i32_1 = arith.constant 0 : i32
    return %c0_i32, %c0_i32_0 : i32, i32
  }
  func.func @transform_6(%arg0: i32) -> (i32, i32, i32) {
    %c0_i32 = arith.constant 0 : i32
    %c0_i32_0 = arith.constant 0 : i32
    %c0_i32_1 = arith.constant 0 : i32
    return %arg0, %c0_i32, %c0_i32_0 : i32, i32, i32
  }
}

</mosaic_0001>

<llo_original>
// kernel: tpu_custom_call.1
$region0: #{tpu_custom_call.1}
  #allocation0 [shape = 'u32[]', space=smem, size = 0x4, offset = 0x4, fixed_abs, tag = 'smem constant byte address 0x4 - core index']
  #allocation1 [shape = 'u32[144,128]{1,0:T(1,128)}', space=vmem, size = 0x12000, scoped, tag = 'internal scratch']
  %s0 = inlined_call_operand.vmem [shape: bf16[2,48,16], index: 0, kind: input, shape index: {}]
  %s1 = inlined_call_operand.vmem [shape: bf16[32,48], index: 1, kind: input, shape index: {}]
  %s2 = inlined_call_operand.vmem [shape: f32[32,2], index: 2, kind: input, shape index: {}]
  %s3 = inlined_call_operand.vmem [shape: bf16[32,32], index: 3, kind: input, shape index: {}]
  %s4 = inlined_call_operand.vmem [shape: f32[32,1], index: 4, kind: input, shape index: {}]
  %s5 = inlined_call_operand.vmem [shape: f32[32,16], index: 5, kind: input, shape index: {}]
  %s6 = inlined_call_operand.vmem [shape: f32[2,32,16], index: 6, kind: output, shape index: {}]
  %s7 = sld [smem:[#allocation0]]
  $region57: #{tpu_custom_call.1} parent=0
    _
  %s9 = ssub.s32 1, %s7
  %s10 = scalar_select 0, %s9, %s7
  loop: start=0, step=1, limit=4
  $region2: #{tpu_custom_call.1} parent=0 // loop_pre_header
    _
  $region3: #{tpu_custom_call.1} parent=0 // loop_header
    %s12 = sphi 0, %s16
    %p13 = scmp.ge.s32.totalorder %s12, 4
    %s22 = sphi 0, %s24
    %s25 = sphi 0, %s22
    %s26 = sphi 0, %s25
    %s42 = sphi 0, %s26
    %s46 = sphi 0, %s46
    %s48 = sphi 0, %s46
    %s49 = sphi 0, %s48
    %s63 = sphi 0, %s49
    %s67 = sphi 0, %s67
    %s69 = sphi 0, %s67
    %s70 = sphi 0, %s69
    %s84 = sphi 0, %s70
    %s88 = sphi 0, %s88
    %s90 = sphi 0, %s88
    %s91 = sphi 0, %s90
    %s105 = sphi 0, %s91
    %s109 = sphi 0, %s109
    %s111 = sphi 0, %s109
    %s112 = sphi 0, %s111
    %s126 = sphi 0, %s112
    %s130 = sphi 0, %s130
    %s132 = sphi 0, %s130
    %s133 = sphi 0, %s132
    %s147 = sphi 0, %s133
    %s153 = sphi 0, %s155
    %s156 = sphi 0, %s153
    %s157 = sphi 0, %s156
    %s173 = sphi 0, %s157
  $region4: #{tpu_custom_call.1} parent=0 // loop_header_branch
    %15 = sbr.rel (%p13) target = $region8
  $region5: #{tpu_custom_call.1} parent=0 // loop_body
    %s17 = ssub.s32 %s12, 1
    %s18 = ssub.s32 %s12, 2
    %s19 = sadd.s32 %s12, 1
    %s20 = ssub.s32 %s12, %s19
    %p21 = scmp.eq.s32.totalorder %s20, 0
    %s23 = sadd.s32 %s22, 1
    %s24 = scalar_select %p21, %s22, %s23
    %p27 = pneg %p21
    %p28 = scmp.eq.s32.totalorder %s12, 1
    %p29 = por %p27, %p28
    %p30 = scmp.ne.s32.totalorder %s22, %s25
    %p31 = scmp.eq.s32.totalorder %s12, 0
    %p32 = por %p30, %p31
    %p33 = scmp.ne.s32.totalorder %s22, %s25
    %p34 = scmp.eq.s32.totalorder %s17, 1
    %p35 = por %p33, %p34
    %p36 = scmp.ne.s32.totalorder %s25, %s26
    %p37 = scmp.eq.s32.totalorder %s17, 0
    %p38 = por %p36, %p37
    %p39 = scmp.ne.s32.totalorder %s25, %s26
    %p40 = scmp.eq.s32.totalorder %s18, 1
    %p41 = por %p39, %p40
    %p43 = scmp.ne.s32.totalorder %s26, %s42
    %p44 = scmp.eq.s32.totalorder %s18, 0
    %p45 = por %p43, %p44
    %s47 = sadd.s32 %s46, 1
    %p50 = scmp.eq.s32.totalorder %s12, 1
    %p51 = scmp.ne.s32.totalorder %s46, %s48
    %p52 = scmp.eq.s32.totalorder %s12, 0
    %p53 = por %p51, %p52
    %p54 = scmp.ne.s32.totalorder %s46, %s48
    %p55 = scmp.eq.s32.totalorder %s17, 1
    %p56 = por %p54, %p55
    %p57 = scmp.ne.s32.totalorder %s48, %s49
    %p58 = scmp.eq.s32.totalorder %s17, 0
    %p59 = por %p57, %p58
    %p60 = scmp.ne.s32.totalorder %s48, %s49
    %p61 = scmp.eq.s32.totalorder %s18, 1
    %p62 = por %p60, %p61
    %p64 = scmp.ne.s32.totalorder %s49, %s63
    %p65 = scmp.eq.s32.totalorder %s18, 0
    %p66 = por %p64, %p65
    %s68 = sadd.s32 %s67, 1
    %p71 = scmp.eq.s32.totalorder %s12, 1
    %p72 = scmp.ne.s32.totalorder %s67, %s69
    %p73 = scmp.eq.s32.totalorder %s12, 0
    %p74 = por %p72, %p73
    %p75 = scmp.ne.s32.totalorder %s67, %s69
    %p76 = scmp.eq.s32.totalorder %s17, 1
    %p77 = por %p75, %p76
    %p78 = scmp.ne.s32.totalorder %s69, %s70
    %p79 = scmp.eq.s32.totalorder %s17, 0
    %p80 = por %p78, %p79
    %p81 = scmp.ne.s32.totalorder %s69, %s70
    %p82 = scmp.eq.s32.totalorder %s18, 1
    %p83 = por %p81, %p82
    %p85 = scmp.ne.s32.totalorder %s70, %s84
    %p86 = scmp.eq.s32.totalorder %s18, 0
    %p87 = por %p85, %p86
    %s89 = sadd.s32 %s88, 1
    %p92 = scmp.eq.s32.totalorder %s12, 1
    %p93 = scmp.ne.s32.totalorder %s88, %s90
    %p94 = scmp.eq.s32.totalorder %s12, 0
    %p95 = por %p93, %p94
    %p96 = scmp.ne.s32.totalorder %s88, %s90
    %p97 = scmp.eq.s32.totalorder %s17, 1
    %p98 = por %p96, %p97
    %p99 = scmp.ne.s32.totalorder %s90, %s91
    %p100 = scmp.eq.s32.totalorder %s17, 0
    %p101 = por %p99, %p100
    %p102 = scmp.ne.s32.totalorder %s90, %s91
    %p103 = scmp.eq.s32.totalorder %s18, 1
    %p104 = por %p102, %p103
    %p106 = scmp.ne.s32.totalorder %s91, %s105
    %p107 = scmp.eq.s32.totalorder %s18, 0
    %p108 = por %p106, %p107
    %s110 = sadd.s32 %s109, 1
    %p113 = scmp.eq.s32.totalorder %s12, 1
    %p114 = scmp.ne.s32.totalorder %s109, %s111
    %p115 = scmp.eq.s32.totalorder %s12, 0
    %p116 = por %p114, %p115
    %p117 = scmp.ne.s32.totalorder %s109, %s111
    %p118 = scmp.eq.s32.totalorder %s17, 1
    %p119 = por %p117, %p118
    %p120 = scmp.ne.s32.totalorder %s111, %s112
    %p121 = scmp.eq.s32.totalorder %s17, 0
    %p122 = por %p120, %p121
    %p123 = scmp.ne.s32.totalorder %s111, %s112
    %p124 = scmp.eq.s32.totalorder %s18, 1
    %p125 = por %p123, %p124
    %p127 = scmp.ne.s32.totalorder %s112, %s126
    %p128 = scmp.eq.s32.totalorder %s18, 0
    %p129 = por %p127, %p128
    %s131 = sadd.s32 %s130, 1
    %p134 = scmp.eq.s32.totalorder %s12, 1
    %p135 = scmp.ne.s32.totalorder %s130, %s132
    %p136 = scmp.eq.s32.totalorder %s12, 0
    %p137 = por %p135, %p136
    %p138 = scmp.ne.s32.totalorder %s130, %s132
    %p139 = scmp.eq.s32.totalorder %s17, 1
    %p140 = por %p138, %p139
    %p141 = scmp.ne.s32.totalorder %s132, %s133
    %p142 = scmp.eq.s32.totalorder %s17, 0
    %p143 = por %p141, %p142
    %p144 = scmp.ne.s32.totalorder %s132, %s133
    %p145 = scmp.eq.s32.totalorder %s18, 1
    %p146 = por %p144, %p145
    %p148 = scmp.ne.s32.totalorder %s133, %s147
    %p149 = scmp.eq.s32.totalorder %s18, 0
    %p150 = por %p148, %p149
    %s151 = ssub.s32 %s12, %s19
    %p152 = scmp.eq.s32.totalorder %s151, 0
    %s154 = sadd.s32 %s153, 1
    %s155 = scalar_select %p152, %s153, %s154
    %p158 = pneg %p152
    %p159 = scmp.eq.s32.totalorder %s12, 1
    %p160 = por %p158, %p159
    %p161 = scmp.ne.s32.totalorder %s153, %s156
    %p162 = scmp.eq.s32.totalorder %s12, 0
    %p163 = por %p161, %p162
    %p164 = scmp.ne.s32.totalorder %s153, %s156
    %p165 = scmp.eq.s32.totalorder %s17, 1
    %p166 = por %p164, %p165
    %p167 = scmp.ne.s32.totalorder %s156, %s157
    %p168 = scmp.eq.s32.totalorder %s17, 0
    %p169 = por %p167, %p168
    %p170 = scmp.ne.s32.totalorder %s156, %s157
    %p171 = scmp.eq.s32.totalorder %s18, 1
    %p172 = por %p170, %p171
    %p174 = scmp.ne.s32.totalorder %s157, %s173
    %p175 = scmp.eq.s32.totalorder %s18, 0
    %p176 = por %p174, %p175
    %p177 = scmp.le.s32.totalorder 1, %s12
    %p178 = scmp.lt.s32.totalorder %s12, 3
    %p179 = pnand %p177, %p178
    %p180 = pneg %p179
    // Predicated region
    $region9: #{tpu_custom_call.1} parent=5 // pred_check
      _
    $region10: #{tpu_custom_call.1} parent=5 // pred_check_branch
      %182 = sbr.rel (%p179) target = $region12
    $region11: #{tpu_custom_call.1} parent=5 // pred_region
      %s183 = ssub.s32 %s12, 1
      // Predicated region
      $region13: #{tpu_custom_call.1} parent=11 // pred_check
        %p184 = pneg %p59
      $region14: #{tpu_custom_call.1} parent=11 // pred_check_branch
        %186 = sbr.rel (%p184) target = $region16
      $region15: #{tpu_custom_call.1} parent=11 // pred_region
        _
      $region16: #{tpu_custom_call.1} parent=11 // pred_fallthru
        _
      // Predicated region
      $region17: #{tpu_custom_call.1} parent=11 // pred_check
        %p187 = pneg %p80
      $region18: #{tpu_custom_call.1} parent=11 // pred_check_branch
        %189 = sbr.rel (%p187) target = $region20
      $region19: #{tpu_custom_call.1} parent=11 // pred_region
        _
      $region20: #{tpu_custom_call.1} parent=11 // pred_fallthru
        _
      // Predicated region
      $region21: #{tpu_custom_call.1} parent=11 // pred_check
        %p190 = pneg %p101
      $region22: #{tpu_custom_call.1} parent=11 // pred_check_branch
        %192 = sbr.rel (%p190) target = $region24
      $region23: #{tpu_custom_call.1} parent=11 // pred_region
        _
      $region24: #{tpu_custom_call.1} parent=11 // pred_fallthru
        _
      // Predicated region
      $region25: #{tpu_custom_call.1} parent=11 // pred_check
        %p193 = pneg %p122
      $region26: #{tpu_custom_call.1} parent=11 // pred_check_branch
        %195 = sbr.rel (%p193) target = $region28
      $region27: #{tpu_custom_call.1} parent=11 // pred_region
        _
      $region28: #{tpu_custom_call.1} parent=11 // pred_fallthru
        _
      // Predicated region
      $region29: #{tpu_custom_call.1} parent=11 // pred_check
        %p196 = pneg %p143
      $region30: #{tpu_custom_call.1} parent=11 // pred_check_branch
        %198 = sbr.rel (%p196) target = $region32
      $region31: #{tpu_custom_call.1} parent=11 // pred_region
        _
      $region32: #{tpu_custom_call.1} parent=11 // pred_fallthru
        _
    $region12: #{tpu_custom_call.1} parent=5 // pred_fallthru
      _
    %p199 = scmp.lt.s32.totalorder %s12, 2
    // Predicated region
    $region33: #{tpu_custom_call.1} parent=5 // pred_check
      %p200 = pneg %p199
    $region34: #{tpu_custom_call.1} parent=5 // pred_check_branch
      %202 = sbr.rel (%p200) target = $region36
    $region35: #{tpu_custom_call.1} parent=5 // pred_region
      // Predicated region
      $region37: #{tpu_custom_call.1} parent=35 // pred_check
        %p203 = pneg %p32
      $region38: #{tpu_custom_call.1} parent=35 // pred_check_branch
        %205 = sbr.rel (%p203) target = $region40
      $region39: #{tpu_custom_call.1} parent=35 // pred_region
        %p206 = scmp.lt.s32.totalorder %s12, 1
        %s207 = scalar_select %p206, %s12, 1
        %s208 = smul.addr %s207, 6
        %s209 = smul.addr %s208, 4
        %s210 = scalar_lea.vmem %s0, %s209
      $region40: #{tpu_custom_call.1} parent=35 // pred_fallthru
        _
    $region36: #{tpu_custom_call.1} parent=5 // pred_fallthru
      _
    %p211 = scmp.le.s32.totalorder 1, %s12
    %p212 = scmp.lt.s32.totalorder %s12, 3
    %p213 = pnand %p211, %p212
    %p214 = pneg %p213
    // Predicated region
    $region41: #{tpu_custom_call.1} parent=5 // pred_check
      _
    $region42: #{tpu_custom_call.1} parent=5 // pred_check_branch
      %216 = sbr.rel (%p213) target = $region44
    $region43: #{tpu_custom_call.1} parent=5 // pred_region
      %s217 = ssub.s32 %s12, 1
      %p218 = scmp.lt.s32.totalorder %s17, 1
      %s219 = scalar_select %p218, %s17, 1
      %s220 = smul.addr %s219, 6
      %s221 = smul.addr %s220, 4
      %s222 = scalar_lea.vmem %s0, %s221
      %p223 = pneg %p38
      %p224 = pneg %p35
      %p225 = pneg %p59
      %p226 = pneg %p56
      %p227 = pneg %p80
      %p228 = pneg %p77
      %p229 = pneg %p101
      %p230 = pneg %p98
      %p231 = pneg %p122
      %p232 = pneg %p119
      %p233 = pneg %p143
      %p234 = pneg %p140
      %p235 = pneg %p169
      %p236 = pneg %p166
      %p237 = scmp.lt.s32.totalorder %s17, 1
      %s238 = scalar_select %p237, %s17, 1
      %s239 = smul.addr %s238, 4
      %s240 = smul.addr %s239, 8
      %s241 = scalar_lea.vmem %s6, %s240
      %p242 = scmp.lt.s32.totalorder %s17, 1
      %s243 = scalar_select %p242, %s17, 1
      %s244 = smul.addr %s243, 6
      %s245 = smul.addr %s244, 4
      %s246 = scalar_lea.vmem %s0, %s245
      %p247 = scmp.lt.s32.totalorder %s17, 1
      %s248 = scalar_select %p247, %s17, 1
      %s249 = smul.addr %s248, 4
      %s250 = smul.addr %s249, 8
      %s251 = scalar_lea.vmem %s6, %s250
      %v253 = vld [vmem:[%s1] sm:$0xf]
      %v254 = vld [vmem:[%s1 + $0x4] sm:$0xf]
      %v255 = vld [vmem:[%s1 + $0x8] sm:$0xf]
      %v256 = vld [vmem:[%s1 + $0xc] sm:$0xf]
      %v257 = vld [vmem:[%s246] sm:$0xf]
      %v258 = vld [vmem:[%s246 + $0x4] sm:$0xf]
      %v259 = vld [vmem:[%s246 + $0x8] sm:$0xf]
      %v260 = vld [vmem:[%s246 + $0xc] sm:$0xf]
      %v261 = vld [vmem:[%s246 + $0x10] sm:$0xf]
      %v262 = vld [vmem:[%s246 + $0x14] sm:$0xf]
      %v267 = vunpack.c.l.b16 %v253
      %v268 = vunpack.c.l.b16 %v254
      %v269 = vunpack.c.l.b16 %v255
      %v270 = vunpack.c.l.b16 %v256
      %v271 = vpack.c.b16 %v268, %v267
      %v272 = vpack.c.b16 %v270, %v269
      %v279 = vunpack.c.l.b16 %v257
      %v280 = vunpack.c.l.b16 %v258
      %v281 = vunpack.c.l.b16 %v259
      %v282 = vunpack.c.l.b16 %v260
      %v283 = vunpack.c.l.b16 %v261
      %v284 = vunpack.c.l.b16 %v262
      %v285 = vpack.c.b16 %v280, %v279
      %v286 = vpack.c.b16 %v282, %v281
      %v287 = vpack.c.b16 %v284, %v283
      %vm291 = vcmask 392192
      %v293 = vsel %vm291, %v271, 0
      %v296 = vsel %vm291, %v272, 0
      %298 = vmatprep.subr.bf16.mxu0 0
      %299 = vmatpush1.bf16.msra.mxu0 %v285
      %300 = vmatprep.subr.bf16.mxu0 0
      %301 = vmatpush1.bf16.msra.mxu0 %v286
      %302 = vmatprep.subr.bf16.mxu0 0
      %303 = vmatpush1.bf16.msra.mxu0 %v287
      %304 = vmatprep.subr.bf16.mxu0 0
      %305 = vmatpush1.bf16.msra.mxu0 0
      %306 = vmatprep.subr.bf16.mxu0 0
      %307 = vmatpush1.bf16.msra.mxu0 0
      %308 = vmatprep.subr.bf16.mxu0 0
      %309 = vmatpush1.bf16.msra.mxu0 0
      %310 = vmatprep.subr.bf16.mxu0 0
      %311 = vmatpush1.bf16.msra.mxu0 0
      %312 = vmatprep.subr.bf16.mxu0 0
      %313 = vmatpush1.bf16.msra.mxu0 0
      %314 = vmatprep.subr.bf16.mxu0 0
      %315 = vmatpush1.bf16.msra.mxu0 0
      %316 = vmatprep.subr.bf16.mxu0 0
      %317 = vmatpush1.bf16.msra.mxu0 0
      %318 = vmatprep.subr.bf16.mxu0 0
      %319 = vmatpush1.bf16.msra.mxu0 0
      %320 = vmatprep.subr.bf16.mxu0 0
      %321 = vmatpush1.bf16.msra.mxu0 0
      %322 = vmatprep.subr.bf16.mxu0 0
      %323 = vmatpush1.bf16.msra.mxu0 0
      %324 = vmatprep.subr.bf16.mxu0 0
      %325 = vmatpush1.bf16.msra.mxu0 0
      %326 = vmatprep.subr.bf16.mxu0 0
      %327 = vmatpush1.bf16.msra.mxu0 0
      %328 = vmatprep.subr.bf16.mxu0 0
      %329 = vmatpush1.bf16.msra.mxu0 0
      %330 = vmatprep.mubr.bf16.mxu0 0
      %331 = vmatmul.mubr.bf16.gmra.mrb[0].mxu0 %v293
      %v332 = vpop.f32.mrb[0].mxu0
      %v333 = vadd.f32 0.0, %v332
      %v334 = vpop.f32.mrb[0].mxu0
      %v335 = vpop.f32.mrb[0].mxu0
      %v336 = vadd.f32 0.0, %v335
      %v337 = vpop.f32.mrb[0].mxu0
      %338 = vmatprep.mubr.bf16.mxu0 0
      %339 = vmatmul.mubr.bf16.gmra.mrb[0].mxu0 %v296
      %v340 = vpop.f32.mrb[0].mxu0
      %v341 = vadd.f32 0.0, %v340
      %v342 = vpop.f32.mrb[0].mxu0
      %v343 = vpop.f32.mrb[0].mxu0
      %v344 = vadd.f32 0.0, %v343
      %v345 = vpop.f32.mrb[0].mxu0
      %346 = vdwg.mxu0
      %vm347 = vcmask 130048
      %v348 = vsel %vm347, %v333, 0.0
      %349 = vadd.xlane.f32.xlu0 %v348
      %v350 = vpop.xlane.xlu0 %349
      %v351 = vsel %vm347, %v336, 0.0
      %352 = vadd.xlane.f32.xlu0 %v351
      %v353 = vpop.xlane.xlu0 %352
      %v354 = vsel %vm347, %v341, 0.0
      %355 = vadd.xlane.f32.xlu0 %v354
      %v356 = vpop.xlane.xlu0 %355
      %v357 = vsel %vm347, %v344, 0.0
      %358 = vadd.xlane.f32.xlu0 %v357
      %v359 = vpop.xlane.xlu0 %358
      %v360 = vmul.f32 %v333, %v333
      %v361 = vmul.f32 %v336, %v336
      %v362 = vmul.f32 %v341, %v341
      %v363 = vmul.f32 %v344, %v344
      %v364 = vsel %vm347, %v360, 0.0
      %365 = vadd.xlane.f32.xlu0 %v364
      %v366 = vpop.xlane.xlu0 %365
      %v367 = vsel %vm347, %v361, 0.0
      %368 = vadd.xlane.f32.xlu0 %v367
      %v369 = vpop.xlane.xlu0 %368
      %v370 = vsel %vm347, %v362, 0.0
      %371 = vadd.xlane.f32.xlu0 %v370
      %v372 = vpop.xlane.xlu0 %371
      %v373 = vsel %vm347, %v363, 0.0
      %374 = vadd.xlane.f32.xlu0 %v373
      %v375 = vpop.xlane.xlu0 %374
      %v376 = vmul.f32 %v350, 0.0625
      %v377 = vmul.f32 %v353, 0.0625
      %v378 = vmul.f32 %v356, 0.0625
      %v379 = vmul.f32 %v359, 0.0625
      %v380 = vmul.f32 %v366, 0.0625
      %v381 = vmul.f32 %v369, 0.0625
      %v382 = vmul.f32 %v372, 0.0625
      %v383 = vmul.f32 %v375, 0.0625
      %v384 = vmul.f32 %v376, %v376
      %v385 = vmul.f32 %v377, %v377
      %v386 = vmul.f32 %v378, %v378
      %v387 = vmul.f32 %v379, %v379
      %v388 = vsub.f32 %v380, %v384
      %v389 = vsub.f32 %v381, %v385
      %v390 = vsub.f32 %v382, %v386
      %v391 = vsub.f32 %v383, %v387
      %v392 = vmax.f32 %v388, 0.0
      %v393 = vmax.f32 %v389, 0.0
      %v394 = vmax.f32 %v390, 0.0
      %v395 = vmax.f32 %v391, 0.0
      %v396 = vld [vmem:[%s2] sm:$0xff]
      %v397 = vld [vmem:[%s2 + $0x8] sm:$0xff]
      %v398 = vld [vmem:[%s2 + $0x10] sm:$0xff]
      %v399 = vld [vmem:[%s2 + $0x18] sm:$0xff]
      %v400 = vadd.f32 %v392, 1e-05
      %v401 = vadd.f32 %v393, 1e-05
      %v402 = vadd.f32 %v394, 1e-05
      %v403 = vadd.f32 %v395, 1e-05
      %v404 = vrsqrt.pop %v400
      %v405 = vrsqrt.pop %v401
      %v406 = vrsqrt.pop %v402
      %v407 = vrsqrt.pop %v403
      %v408 = vmul.f32 %v396, %v404
      %v409 = vmul.f32 %v397, %v405
      %v410 = vmul.f32 %v398, %v406
      %v411 = vmul.f32 %v399, %v407
      %v412 = vmul.f32 %v376, %v408
      %v413 = vmul.f32 %v377, %v409
      %v414 = vmul.f32 %v378, %v410
      %v415 = vmul.f32 %v379, %v411
      %420 = vrot.lane.b32.xlu0 %v412, 1
      %v421 = vpop.permute.xlu0 %420
      %422 = vrot.lane.b32.xlu0 %v413, 1
      %v423 = vpop.permute.xlu0 %422
      %424 = vrot.lane.b32.xlu0 %v414, 1
      %v425 = vpop.permute.xlu0 %424
      %426 = vrot.lane.b32.xlu0 %v415, 1
      %v427 = vpop.permute.xlu0 %426
      %v432 = vsub.f32 %v396, %v421
      %v433 = vsub.f32 %v397, %v423
      %v434 = vsub.f32 %v398, %v425
      %v435 = vsub.f32 %v399, %v427
      %437 = vset.pattern.permute.xlu0 0
      %438 = vperm.xlu0 %437, %v408
      %v439 = vpop.permute.xlu0 %438
      %442 = vset.pattern.permute.xlu0 0
      %443 = vperm.xlu0 %442, %v409
      %v444 = vpop.permute.xlu0 %443
      %447 = vset.pattern.permute.xlu0 0
      %448 = vperm.xlu0 %447, %v410
      %v449 = vpop.permute.xlu0 %448
      %452 = vset.pattern.permute.xlu0 0
      %453 = vperm.xlu0 %452, %v411
      %v454 = vpop.permute.xlu0 %453
      %v456 = vmul.f32 %v333, %v439
      %v457 = vmul.f32 %v336, %v444
      %v458 = vmul.f32 %v341, %v449
      %v459 = vmul.f32 %v344, %v454
      %461 = vset.pattern.permute.xlu0 1
      %462 = vperm.xlu0 %461, %v432
      %v463 = vpop.permute.xlu0 %462
      %466 = vset.pattern.permute.xlu0 1
      %467 = vperm.xlu0 %466, %v433
      %v468 = vpop.permute.xlu0 %467
      %471 = vset.pattern.permute.xlu0 1
      %472 = vperm.xlu0 %471, %v434
      %v473 = vpop.permute.xlu0 %472
      %476 = vset.pattern.permute.xlu0 1
      %477 = vperm.xlu0 %476, %v435
      %v478 = vpop.permute.xlu0 %477
      %v480 = vadd.f32 %v456, %v463
      %v481 = vadd.f32 %v457, %v468
      %v482 = vadd.f32 %v458, %v473
      %v483 = vadd.f32 %v459, %v478
      %v484 = vmax.f32 %v480, 0.0
      %v485 = vmax.f32 %v481, 0.0
      %v486 = vmax.f32 %v482, 0.0
      %v487 = vmax.f32 %v483, 0.0
      %v488 = vld [vmem:[%s3] sm:$0xf]
      %v489 = vld [vmem:[%s3 + $0x4] sm:$0xf]
      %v490 = vld [vmem:[%s3 + $0x8] sm:$0xf]
      %v491 = vld [vmem:[%s3 + $0xc] sm:$0xf]
      %v492 = vpack.c.bf16 %v485, %v484
      %v493 = vpack.c.bf16 %v487, %v486
      %v494 = vld [vmem:[%s4] sm:$0xff]
      %v495 = vld [vmem:[%s4 + $0x8] sm:$0xff]
      %v496 = vld [vmem:[%s4 + $0x10] sm:$0xff]
      %v497 = vld [vmem:[%s4 + $0x18] sm:$0xff]
      %499 = vset.pattern.permute.xlu0 0
      %500 = vperm.xlu0 %499, %v494
      %v501 = vpop.permute.xlu0 %500
      %504 = vset.pattern.permute.xlu0 0
      %505 = vperm.xlu0 %504, %v495
      %v506 = vpop.permute.xlu0 %505
      %509 = vset.pattern.permute.xlu0 0
      %510 = vperm.xlu0 %509, %v496
      %v511 = vpop.permute.xlu0 %510
      %514 = vset.pattern.permute.xlu0 0
      %515 = vperm.xlu0 %514, %v497
      %v516 = vpop.permute.xlu0 %515
      %v522 = vunpack.c.l.b16 %v488
      %v523 = vunpack.c.l.b16 %v489
      %v524 = vunpack.c.l.b16 %v490
      %v525 = vunpack.c.l.b16 %v491
      %v526 = vpack.c.b16 %v523, %v522
      %v527 = vpack.c.b16 %v525, %v524
      %vm528 = vcmask 261120
      %v530 = vsel %vm528, %v526, 0
      %v533 = vsel %vm528, %v527, 0
      %535 = vmatprep.subr.bf16.mxu0 0
      %536 = vmatpush1.bf16.msra.mxu0 %v492
      %537 = vmatprep.subr.bf16.mxu0 0
      %538 = vmatpush1.bf16.msra.mxu0 %v493
      %539 = vmatprep.subr.bf16.mxu0 0
      %540 = vmatpush1.bf16.msra.mxu0 0
      %541 = vmatprep.subr.bf16.mxu0 0
      %542 = vmatpush1.bf16.msra.mxu0 0
      %543 = vmatprep.subr.bf16.mxu0 0
      %544 = vmatpush1.bf16.msra.mxu0 0
      %545 = vmatprep.subr.bf16.mxu0 0
      %546 = vmatpush1.bf16.msra.mxu0 0
      %547 = vmatprep.subr.bf16.mxu0 0
      %548 = vmatpush1.bf16.msra.mxu0 0
      %549 = vmatprep.subr.bf16.mxu0 0
      %550 = vmatpush1.bf16.msra.mxu0 0
      %551 = vmatprep.subr.bf16.mxu0 0
      %552 = vmatpush1.bf16.msra.mxu0 0
      %553 = vmatprep.subr.bf16.mxu0 0
      %554 = vmatpush1.bf16.msra.mxu0 0
      %555 = vmatprep.subr.bf16.mxu0 0
      %556 = vmatpush1.bf16.msra.mxu0 0
      %557 = vmatprep.subr.bf16.mxu0 0
      %558 = vmatpush1.bf16.msra.mxu0 0
      %559 = vmatprep.subr.bf16.mxu0 0
      %560 = vmatpush1.bf16.msra.mxu0 0
      %561 = vmatprep.subr.bf16.mxu0 0
      %562 = vmatpush1.bf16.msra.mxu0 0
      %563 = vmatprep.subr.bf16.mxu0 0
      %564 = vmatpush1.bf16.msra.mxu0 0
      %565 = vmatprep.subr.bf16.mxu0 0
      %566 = vmatpush1.bf16.msra.mxu0 0
      %567 = vmatprep.mubr.bf16.mxu0 0
      %568 = vmatmul.mubr.bf16.gmra.mrb[0].mxu0 %v530
      %v569 = vpop.f32.mrb[0].mxu0
      %v570 = vadd.f32 %v501, %v569
      %v571 = vpop.f32.mrb[0].mxu0
      %v572 = vpop.f32.mrb[0].mxu0
      %v573 = vadd.f32 %v506, %v572
      %v574 = vpop.f32.mrb[0].mxu0
      %575 = vmatprep.mubr.bf16.mxu0 0
      %576 = vmatmul.mubr.bf16.gmra.mrb[0].mxu0 %v533
      %v577 = vpop.f32.mrb[0].mxu0
      %v578 = vadd.f32 %v511, %v577
      %v579 = vpop.f32.mrb[0].mxu0
      %v580 = vpop.f32.mrb[0].mxu0
      %v581 = vadd.f32 %v516, %v580
      %v582 = vpop.f32.mrb[0].mxu0
      %583 = vdwg.mxu0
      %v584 = vld [vmem:[%s5] sm:$0xff]
      %v585 = vld [vmem:[%s5 + $0x8] sm:$0xff]
      %v586 = vld [vmem:[%s5 + $0x10] sm:$0xff]
      %v587 = vld [vmem:[%s5 + $0x18] sm:$0xff]
      %v588 = vmul.f32 %v570, %v584
      %v589 = vmul.f32 %v573, %v585
      %v590 = vmul.f32 %v578, %v586
      %v591 = vmul.f32 %v581, %v587
      %592 = vst.msk [vmem:[%s251] sm:$0xff] %vm347, %v588
      %593 = vst.msk [vmem:[%s251 + $0x8] sm:$0xff] %vm347, %v589
      %594 = vst.msk [vmem:[%s251 + $0x10] sm:$0xff] %vm347, %v590
      %595 = vst.msk [vmem:[%s251 + $0x18] sm:$0xff] %vm347, %v591
      %p596 = scmp.lt.s32.totalorder %s17, 1
      %s597 = scalar_select %p596, %s17, 1
      %s598 = smul.addr %s597, 4
      %s599 = smul.addr %s598, 8
      %s600 = scalar_lea.vmem %s6, %s599
      // Predicated region
      $region45: #{tpu_custom_call.1} parent=43 // pred_check
        %p601 = pneg %p166
      $region46: #{tpu_custom_call.1} parent=43 // pred_check_branch
        %603 = sbr.rel (%p601) target = $region48
      $region47: #{tpu_custom_call.1} parent=43 // pred_region
        _
      $region48: #{tpu_custom_call.1} parent=43 // pred_fallthru
        _
    $region44: #{tpu_custom_call.1} parent=5 // pred_fallthru
      _
    %p604 = scmp.le.s32.totalorder 2, %s12
    // Predicated region
    $region49: #{tpu_custom_call.1} parent=5 // pred_check
      %p605 = pneg %p604
    $region50: #{tpu_custom_call.1} parent=5 // pred_check_branch
      %607 = sbr.rel (%p605) target = $region52
    $region51: #{tpu_custom_call.1} parent=5 // pred_region
      %s608 = ssub.s32 %s12, 2
      // Predicated region
      $region53: #{tpu_custom_call.1} parent=51 // pred_check
        %p609 = pneg %p172
      $region54: #{tpu_custom_call.1} parent=51 // pred_check_branch
        %611 = sbr.rel (%p609) target = $region56
      $region55: #{tpu_custom_call.1} parent=51 // pred_region
        %p612 = scmp.lt.s32.totalorder %s18, 1
        %s613 = scalar_select %p612, %s18, 1
        %s614 = smul.addr %s613, 4
        %s615 = smul.addr %s614, 8
        %s616 = scalar_lea.vmem %s6, %s615
      $region56: #{tpu_custom_call.1} parent=51 // pred_fallthru
        _
    $region52: #{tpu_custom_call.1} parent=5 // pred_fallthru
      _
  $region6: #{tpu_custom_call.1} parent=0 // loop_footer
    %s16 = sadd.s32 1, %s12
  $region7: #{tpu_custom_call.1} parent=0 // loop_footer_branch
    %11 = sbr.rel target = $region3
  $region8: #{tpu_custom_call.1} parent=0 // loop_exit
    _

</llo_original>
